<compile_context>
chip_gen: v6e
topology: v6e:2x2x1
jax: 0.10.0
libtpu: 0.0.40
codegen_flags: <defaults>
</compile_context>

<pallas_src>
import functools

import jax
import jax.numpy as jnp
from jax.experimental import pallas as pl
from jax.experimental.pallas import tpu as pltpu

EPS = 1e-5  # nn.BatchNorm2d default eps


def _round_up(a, b):
    return (a + b - 1) // b * b


def _vmem_capacity_bytes():
    try:
        return int(pltpu.get_tpu_info().vmem_capacity_bytes)
    except Exception:
        return 64 * 1024 * 1024  # conservative fallback (v7x per-core VMEM)


# --------------------------------------------------------------------------
# Fused path: conv GEMM (K/OC tiled) + streaming BN stats + in-place apply.
# The (toc, M_pad) f32 output slab stays resident in VMEM across m and k.
# --------------------------------------------------------------------------
def _fused_conv_bn_kernel(p_ref, w_ref, g_ref, bta_ref, o_ref,
                          acc_ref, sum_ref, sq_ref,
                          *, m_total, tm, n_m, n_k):
    m = pl.program_id(1)
    k = pl.program_id(2)

    @pl.when((m == 0) & (k == 0))
    def _():                                   # new OC slice: reset BN stats
        sum_ref[...] = jnp.zeros_like(sum_ref)
        sq_ref[...] = jnp.zeros_like(sq_ref)

    @pl.when(k == 0)
    def _():                                   # new M tile: reset accumulator
        acc_ref[...] = jnp.zeros_like(acc_ref)

    acc_ref[...] += jnp.dot(w_ref[...], p_ref[...],
                            preferred_element_type=jnp.float32)

    @pl.when(k == n_k - 1)
    def _():
        y = acc_ref[...]                                   # (toc, tm) f32
        c0 = pl.multiple_of(m * tm, 128)
        o_ref[:, pl.ds(c0, tm)] = y                        # resident store
        # No conv bias + zero-padded patch columns => padded M columns are
        # exactly 0 and add nothing to sum/sumsq; divide by the true M below.
        sum_ref[...] += jnp.sum(y, axis=1, keepdims=True)
        sq_ref[...] += jnp.sum(y * y, axis=1, keepdims=True)

    @pl.when((m == n_m - 1) & (k == n_k - 1))
    def _():
        inv_m = 1.0 / float(m_total)
        mean = sum_ref[...] * inv_m
        var = jnp.maximum(sq_ref[...] * inv_m - mean * mean, 0.0)
        scale = g_ref[...] * jax.lax.rsqrt(var + EPS)
        shift = bta_ref[...] - mean * scale

        @pl.loop(0, n_m)                       # streaming per-tile FMA apply
        def _(t):
            c0 = pl.multiple_of(t * tm, 128)
            blk = o_ref[:, pl.ds(c0, tm)]
            o_ref[:, pl.ds(c0, tm)] = blk * scale + shift


# --------------------------------------------------------------------------
# Fallback path (resident slab would not fit VMEM):
#   pass 1 = GEMM + streaming stats -> (y, scale, shift)
#   pass 2 = in-place FMA over wide lane-dense blocks (aliased output).
# --------------------------------------------------------------------------
def _conv_stats_kernel(p_ref, w_ref, g_ref, bta_ref,
                       y_ref, scale_ref, shift_ref,
                       acc_ref, sum_ref, sq_ref,
                       *, m_total, n_m, n_k):
    m = pl.program_id(1)
    k = pl.program_id(2)

    @pl.when((m == 0) & (k == 0))
    def _():
        sum_ref[...] = jnp.zeros_like(sum_ref)
        sq_ref[...] = jnp.zeros_like(sq_ref)

    @pl.when(k == 0)
    def _():
        acc_ref[...] = jnp.zeros_like(acc_ref)

    acc_ref[...] += jnp.dot(w_ref[...], p_ref[...],
                            preferred_element_type=jnp.float32)

    @pl.when(k == n_k - 1)
    def _():
        y = acc_ref[...]
        y_ref[...] = y
        sum_ref[...] += jnp.sum(y, axis=1, keepdims=True)
        sq_ref[...] += jnp.sum(y * y, axis=1, keepdims=True)

    @pl.when((m == n_m - 1) & (k == n_k - 1))
    def _():
        inv_m = 1.0 / float(m_total)
        mean = sum_ref[...] * inv_m
        var = jnp.maximum(sq_ref[...] * inv_m - mean * mean, 0.0)
        scale = g_ref[...] * jax.lax.rsqrt(var + EPS)
        scale_ref[...] = scale
        shift_ref[...] = bta_ref[...] - mean * scale


def _bn_apply_kernel(y_ref, scale_ref, shift_ref, o_ref):
    o_ref[...] = y_ref[...] * scale_ref[...] + shift_ref[...]


# --------------------------------------------------------------------------
# Wrapper
# --------------------------------------------------------------------------
def conv2d_batchnorm(x, weight, bias, gamma, beta, *, stride=(1, 1),
                     padding=(1, 1), dilation=(1, 1),
                     compute_dtype=jnp.bfloat16):
    """Forward of conv2DBatchNorm (training-mode batch norm). x is NCHW f32.

    `bias` is accepted for API parity with nn.Conv2d(bias=True) but unused:
    the per-channel conv bias only shifts the per-channel mean, which
    training-mode BatchNorm subtracts exactly, so it cancels from the output.
    """
    del bias
    N, C, H, W = x.shape
    OC, _, KH, KW = weight.shape
    sh, sw = stride
    ph, pw = padding
    dh, dw = dilation
    OH = (H + 2 * ph - dh * (KH - 1) - 1) // sh + 1
    OW = (W + 2 * pw - dw * (KW - 1) - 1) // sw + 1
    K = C * KH * KW
    M = N * OH * OW
    esize = jnp.dtype(compute_dtype).itemsize

    # ---- generation-aware VMEM budgets ------------------------------------
    vmem_cap = _vmem_capacity_bytes()
    vmem_limit = int(0.75 * vmem_cap)           # ~96 MiB v5e/v6e, ~48 MiB v7x

    # ---- tiling ------------------------------------------------------------
    toc = min(_round_up(OC, 8), 256)            # OC tile ("parallel" axis)
    OC_pad = _round_up(OC, toc)
    oc_tiles = OC_pad // toc

    k_align = 16 if esize == 2 else 8
    n_k = -(-K // 512)                          # K (reduction) tiles
    tk = _round_up(-(-K // n_k), k_align)
    K_pad = tk * n_k

    def _step_bytes(tm_):
        return (2 * tk * tm_ * esize            # patch tile, double-buffered
                + 2 * toc * tk * esize          # weight tile, double-buffered
                + toc * tm_ * 4                 # f32 accumulator scratch
                + 8 * toc * 4)                  # gamma/beta/sum/sq columns

    step_budget = min(vmem_limit // 3, 16 * 1024 * 1024)
    m_lane = _round_up(M, 128)
    tm = 2048                                   # lane tile (multiple of 128)
    while tm > 128 and _step_bytes(tm) > step_budget:
        tm //= 2
    tm = min(tm, m_lane)
    M_pad = _round_up(M, tm)
    n_m = M_pad // tm

    # ---- im2col into a lane-dense (K, M) layout in the compute dtype -------
    # K ordered (c, kh, kw) to match weight.reshape(OC, C*KH*KW); M ordered
    # (n, oh, ow).
    # TODO(synk): fuse this into the kernel via halo-block DMAs on the padded
    # NCHW input to avoid materializing the KH*KW-times-larger patches in HBM.
    xp = jnp.pad(x, ((0, 0), (0, 0), (ph, ph), (pw, pw))).astype(compute_dtype)
    cols = []
    for kh in range(KH):
        for kw in range(KW):
            h0, w0 = kh * dh, kw * dw
            cols.append(xp[:, :, h0:h0 + sh * OH:sh, w0:w0 + sw * OW:sw])
    patches = (jnp.stack(cols, axis=0)          # (KH*KW, N, C, OH, OW)
               .transpose(2, 0, 1, 3, 4)        # (C, KH*KW, N, OH, OW)
               .reshape(K, M))
    patches = jnp.pad(patches, ((0, K_pad - K), (0, M_pad - M)))

    w_mat = weight.reshape(OC, K).astype(compute_dtype)
    w_mat = jnp.pad(w_mat, ((0, OC_pad - OC), (0, K_pad - K)))

    def _col(v):
        v = v.reshape(-1, 1).astype(jnp.float32)
        return jnp.pad(v, ((0, OC_pad - OC), (0, 0)))

    g_col, bta_col = _col(gamma), _col(beta)

    grid = (oc_tiles, n_m, n_k)
    in_specs = [
        pl.BlockSpec((tk, tm), lambda oc, m, k: (k, m)),
        pl.BlockSpec((toc, tk), lambda oc, m, k: (oc, k)),
        # TODO(synk): pipeline_mode=pl.Buffered(1) on these constant-index
        # inputs once single-buffering is load-bearing (K/OC tiling already
        # bounds their double-buffer cost).
        pl.BlockSpec((toc, 1), lambda oc, m, k: (oc, 0)),
        pl.BlockSpec((toc, 1), lambda oc, m, k: (oc, 0)),
    ]
    scratch = [pltpu.VMEM((toc, tm), jnp.float32),
               pltpu.VMEM((toc, 1), jnp.float32),
               pltpu.VMEM((toc, 1), jnp.float32)]
    dim_sem = ("parallel", "arbitrary", "arbitrary")  # OC split -> v7x 2nd TC

    # Fused path keeps a (toc, M_pad) f32 output slab resident in VMEM
    # (conservatively counted with 2 output buffers).
    fused_bytes = 2 * toc * M_pad * 4 + _step_bytes(tm)
    use_fused = fused_bytes <= int(0.35 * vmem_cap)

    if use_fused:
        out = pl.pallas_call(
            functools.partial(_fused_conv_bn_kernel,
                              m_total=M, tm=tm, n_m=n_m, n_k=n_k),
            out_shape=jax.ShapeDtypeStruct((OC_pad, M_pad), jnp.float32),
            grid_spec=pltpu.PrefetchScalarGridSpec(
                num_scalar_prefetch=0, grid=grid,
                in_specs=in_specs,
                out_specs=pl.BlockSpec((toc, M_pad), lambda oc, m, k: (oc, 0)),
                scratch_shapes=scratch),
            compiler_params=pltpu.CompilerParams(
                dimension_semantics=dim_sem,
                vmem_limit_bytes=vmem_limit),
        )(patches, w_mat, g_col, bta_col)
    else:
        # TODO(synk): on v7x consider recomputing the GEMM in pass 2 instead
        # of storing y (saves the y write + re-read when K is small).
        y_flat, scale, shift = pl.pallas_call(
            functools.partial(_conv_stats_kernel,
                              m_total=M, n_m=n_m, n_k=n_k),
            out_shape=(jax.ShapeDtypeStruct((OC_pad, M_pad), jnp.float32),
                       jax.ShapeDtypeStruct((OC_pad, 1), jnp.float32),
                       jax.ShapeDtypeStruct((OC_pad, 1), jnp.float32)),
            grid_spec=pltpu.PrefetchScalarGridSpec(
                num_scalar_prefetch=0, grid=grid,
                in_specs=in_specs,
                out_specs=(pl.BlockSpec((toc, tm), lambda oc, m, k: (oc, m)),
                           pl.BlockSpec((toc, 1), lambda oc, m, k: (oc, 0)),
                           pl.BlockSpec((toc, 1), lambda oc, m, k: (oc, 0))),
                scratch_shapes=scratch),
            compiler_params=pltpu.CompilerParams(
                dimension_semantics=dim_sem,
                vmem_limit_bytes=vmem_limit),
        )(patches, w_mat, g_col, bta_col)

        # Apply tile decoupled from the GEMM tm: big lane-dense blocks so the
        # pointwise FMA pass hits the HBM roofline, not grid-step overhead.
        apply_budget = min(int(0.25 * vmem_cap), 32 * 1024 * 1024)
        f = n_m
        while f > 1 and (n_m % f != 0 or 4 * toc * f * tm * 4 > apply_budget):
            f -= 1
        ta = f * tm
        out = pl.pallas_call(
            _bn_apply_kernel,
            out_shape=jax.ShapeDtypeStruct((OC_pad, M_pad), jnp.float32),
            grid_spec=pltpu.PrefetchScalarGridSpec(
                num_scalar_prefetch=0, grid=(oc_tiles, M_pad // ta),
                in_specs=[pl.BlockSpec((toc, ta), lambda oc, j: (oc, j)),
                          pl.BlockSpec((toc, 1), lambda oc, j: (oc, 0)),
                          pl.BlockSpec((toc, 1), lambda oc, j: (oc, 0))],
                out_specs=pl.BlockSpec((toc, ta), lambda oc, j: (oc, j))),
            compiler_params=pltpu.CompilerParams(
                dimension_semantics=("parallel", "parallel"),
                vmem_limit_bytes=vmem_limit),
            input_output_aliases={0: 0},        # apply in place, no extra HBM
        )(y_flat, scale, shift)

    # (OC_pad, M_pad) -> (OC, M) -> (OC, N, OH, OW) -> NCHW
    out = out[:OC, :M]
    return out.reshape(OC, N, OH, OW).transpose(1, 0, 2, 3)


def _reference(x, weight, bias, gamma, beta, stride, padding, dilation):
    y = jax.lax.conv_general_dilated(
        x, weight, window_strides=stride,
        padding=[(padding[0], padding[0]), (padding[1], padding[1])],
        rhs_dilation=dilation,
        dimension_numbers=("NCHW", "OIHW", "NCHW"))
    y = y + bias.reshape(1, -1, 1, 1)
    mean = jnp.mean(y, axis=(0, 2, 3), keepdims=True)
    var = jnp.mean((y - mean) ** 2, axis=(0, 2, 3), keepdims=True)
    return ((y - mean) * jax.lax.rsqrt(var + EPS)
            * gamma.reshape(1, -1, 1, 1) + beta.reshape(1, -1, 1, 1))


if __name__ == "__main__":
    # conv2DBatchNorm(in_channels=4, out_channels=8, kernel_size=3,
    #                 stride=1, padding=1, dilation=1, bias=True)
    N, C, H, W = 2, 4, 16, 16
    OC, KH, KW = 8, 3, 3
    stride, padding, dilation = (1, 1), (1, 1), (1, 1)

    key = jax.random.PRNGKey(0)
    kx, kw, kb = jax.random.split(key, 3)
    x = jax.random.normal(kx, (N, C, H, W), dtype=jnp.float32)
    weight = 0.1 * jax.random.normal(kw, (OC, C, KH, KW), dtype=jnp.float32)
    bias = 0.1 * jax.random.normal(kb, (OC,), dtype=jnp.float32)
    gamma = jnp.ones((OC,), dtype=jnp.float32)   # BatchNorm2d default weight
    beta = jnp.zeros((OC,), dtype=jnp.float32)   # BatchNorm2d default bias

    ref = _reference(x, weight, bias, gamma, beta, stride, padding, dilation)

    # 1) Strict structural/numerical check with f32 MXU inputs.
    out_f32 = conv2d_batchnorm(x, weight, bias, gamma, beta,
                               stride=stride, padding=padding,
                               dilation=dilation, compute_dtype=jnp.float32)
    out_f32 = jax.block_until_ready(out_f32)
    assert out_f32.shape == ref.shape == (N, OC, H, W)
    assert jnp.max(jnp.abs(out_f32 - ref)) < 1e-4

    # 2) Default production path: bf16 MXU inputs, f32 accumulation.
    out_bf16 = conv2d_batchnorm(x, weight, bias, gamma, beta,
                                stride=stride, padding=padding,
                                dilation=dilation)
    out_bf16 = jax.block_until_ready(out_bf16)
    # Tight check vs a reference fed the same bf16-quantized inputs (only
    # accumulation-order differences remain).
    xq = x.astype(jnp.bfloat16).astype(jnp.float32)
    wq = weight.astype(jnp.bfloat16).astype(jnp.float32)
    ref_q = _reference(xq, wq, bias, gamma, beta, stride, padding, dilation)
    assert jnp.max(jnp.abs(out_bf16 - ref_q)) < 1e-3
    # Loose sanity vs the full-precision reference (BN output is unit-scale;
    # deviation is bounded by bf16 input rounding).
    assert jnp.max(jnp.abs(out_bf16 - ref)) < 2e-1

    print("KERNEL_OK")
</pallas_src>

<mosaic_0001>
module attributes {stable_mosaic.version = 11 : i64} {
  func.func @_fused_conv_bn_kernel(%arg0: i32, %arg1: i32, %arg2: i32, %arg3: memref<40x512xf32, #tpu.memory_space<vmem>>, %arg4: memref<8x40xf32, #tpu.memory_space<vmem>>, %arg5: memref<8x1xf32, #tpu.memory_space<vmem>>, %arg6: memref<8x1xf32, #tpu.memory_space<vmem>>, %arg7: memref<8x512xf32, #tpu.memory_space<vmem>>, %arg8: memref<8x512xf32, #tpu.memory_space<vmem>>, %arg9: memref<8x1xf32, #tpu.memory_space<vmem>>, %arg10: memref<8x1xf32, #tpu.memory_space<vmem>>) attributes {dimension_semantics = [#tpu.dimension_semantics<parallel>, #tpu.dimension_semantics<arbitrary>, #tpu.dimension_semantics<arbitrary>], iteration_bounds = array<i64: 1, 1, 1>, scalar_prefetch = 0 : i64, scratch_operands = 3 : i64, tpu.core_type = #tpu.core_type<tc>, window_params = [{transform_indices = @transform_0, window_bounds = array<i64: 40, 512>}, {transform_indices = @transform_1, window_bounds = array<i64: 8, 40>}, {transform_indices = @transform_2, window_bounds = array<i64: 8, 1>}, {transform_indices = @transform_3, window_bounds = array<i64: 8, 1>}, {transform_indices = @transform_4, window_bounds = array<i64: 8, 512>}]} {
    %c0_i32 = arith.constant 0 : i32
    %0 = arith.cmpi eq, %arg1, %c0_i32 : i32
    %c0_i32_0 = arith.constant 0 : i32
    %1 = arith.cmpi eq, %arg2, %c0_i32_0 : i32
    %2 = arith.andi %0, %1 : i1
    %3 = arith.extui %2 : i1 to i32
    %c0_i32_1 = arith.constant 0 : i32
    %4 = arith.cmpi ne, %3, %c0_i32_1 : i32
    scf.if %4 {
      %cst_16 = arith.constant 0.000000e+00 : f32
      %22 = vector.broadcast %cst_16 : f32 to vector<8x1xf32>
      %c0_17 = arith.constant 0 : index
      %c0_18 = arith.constant 0 : index
      %23 = vector.load %arg9[%c0_17, %c0_18] : memref<8x1xf32, #tpu.memory_space<vmem>>, vector<8x1xf32>
      tpu.vector_store %arg9[%c0_17, %c0_18], %22 {strides = array<i32>} : memref<8x1xf32, #tpu.memory_space<vmem>>, vector<8x1xf32>,
      %cst_19 = arith.constant 0.000000e+00 : f32
      %24 = vector.broadcast %cst_19 : f32 to vector<8x1xf32>
      %c0_20 = arith.constant 0 : index
      %c0_21 = arith.constant 0 : index
      %25 = vector.load %arg10[%c0_20, %c0_21] : memref<8x1xf32, #tpu.memory_space<vmem>>, vector<8x1xf32>
      tpu.vector_store %arg10[%c0_20, %c0_21], %24 {strides = array<i32>} : memref<8x1xf32, #tpu.memory_space<vmem>>, vector<8x1xf32>,
    } else {
    }
    %c0_i32_2 = arith.constant 0 : i32
    %5 = arith.cmpi eq, %arg2, %c0_i32_2 : i32
    %6 = arith.extui %5 : i1 to i32
    %c0_i32_3 = arith.constant 0 : i32
    %7 = arith.cmpi ne, %6, %c0_i32_3 : i32
    scf.if %7 {
      %cst_16 = arith.constant 0.000000e+00 : f32
      %22 = vector.broadcast %cst_16 : f32 to vector<8x512xf32>
      %c0_17 = arith.constant 0 : index
      %c0_18 = arith.constant 0 : index
      %23 = vector.load %arg8[%c0_17, %c0_18] : memref<8x512xf32, #tpu.memory_space<vmem>>, vector<8x512xf32>
      tpu.vector_store %arg8[%c0_17, %c0_18], %22 {strides = array<i32>} : memref<8x512xf32, #tpu.memory_space<vmem>>, vector<8x512xf32>,
    } else {
    }
    %c0 = arith.constant 0 : index
    %c0_4 = arith.constant 0 : index
    %8 = vector.load %arg8[%c0, %c0_4] : memref<8x512xf32, #tpu.memory_space<vmem>>, vector<8x512xf32>
    %c0_5 = arith.constant 0 : index
    %c0_6 = arith.constant 0 : index
    %9 = vector.load %arg4[%c0_5, %c0_6] : memref<8x40xf32, #tpu.memory_space<vmem>>, vector<8x40xf32>
    %c0_7 = arith.constant 0 : index
    %c0_8 = arith.constant 0 : index
    %10 = vector.load %arg3[%c0_7, %c0_8] : memref<40x512xf32, #tpu.memory_space<vmem>>, vector<40x512xf32>
    %cst = arith.constant dense<0.000000e+00> : vector<8x512xf32>
    %11 = tpu.matmul %9, %10, %cst {dimension_numbers = #tpu.dot_dimension_numbers<[1], [0], [0], [1], [0, 0, 1, 1], [], []>} : vector<8x40xf32>, vector<40x512xf32>, vector<8x512xf32> -> vector<8x512xf32>
    %12 = arith.addf %8, %11 : vector<8x512xf32>
    %c0_9 = arith.constant 0 : index
    %c0_10 = arith.constant 0 : index
    %13 = vector.load %arg8[%c0_9, %c0_10] : memref<8x512xf32, #tpu.memory_space<vmem>>, vector<8x512xf32>
    tpu.vector_store %arg8[%c0_9, %c0_10], %12 {strides = array<i32>} : memref<8x512xf32, #tpu.memory_space<vmem>>, vector<8x512xf32>,
    %c0_i32_11 = arith.constant 0 : i32
    %14 = arith.cmpi eq, %arg2, %c0_i32_11 : i32
    %15 = arith.extui %14 : i1 to i32
    %c0_i32_12 = arith.constant 0 : i32
    %16 = arith.cmpi ne, %15, %c0_i32_12 : i32
    scf.if %16 {
      %c0_16 = arith.constant 0 : index
      %c0_17 = arith.constant 0 : index
      %22 = vector.load %arg8[%c0_16, %c0_17] : memref<8x512xf32, #tpu.memory_space<vmem>>, vector<8x512xf32>
      %c512_i32 = arith.constant 512 : i32
      %23 = arith.muli %arg1, %c512_i32 : i32
      %24 = tpu.assume_multiple %23, 128 : i32
      %c0_18 = arith.constant 0 : index
      %25 = arith.index_cast %24 : i32 to index
      %26 = vector.load %arg7[%c0_18, %25] : memref<8x512xf32, #tpu.memory_space<vmem>>, vector<8x512xf32>
      tpu.vector_store %arg7[%c0_18, %25], %22 {strides = array<i32>} : memref<8x512xf32, #tpu.memory_space<vmem>>, vector<8x512xf32>,
      %c0_19 = arith.constant 0 : index
      %c0_20 = arith.constant 0 : index
      %27 = vector.load %arg9[%c0_19, %c0_20] : memref<8x1xf32, #tpu.memory_space<vmem>>, vector<8x1xf32>
      %cst_21 = arith.constant dense<0.000000e+00> : vector<8xf32>
      %28 = vector.multi_reduction <add>, %22, %cst_21 [1] : vector<8x512xf32> to vector<8xf32>
      %29 = vector.shape_cast %28 : vector<8xf32> to vector<8x1xf32>
      %30 = arith.addf %27, %29 : vector<8x1xf32>
      %c0_22 = arith.constant 0 : index
      %c0_23 = arith.constant 0 : index
      %31 = vector.load %arg9[%c0_22, %c0_23] : memref<8x1xf32, #tpu.memory_space<vmem>>, vector<8x1xf32>
      tpu.vector_store %arg9[%c0_22, %c0_23], %30 {strides = array<i32>} : memref<8x1xf32, #tpu.memory_space<vmem>>, vector<8x1xf32>,
      %c0_24 = arith.constant 0 : index
      %c0_25 = arith.constant 0 : index
      %32 = vector.load %arg10[%c0_24, %c0_25] : memref<8x1xf32, #tpu.memory_space<vmem>>, vector<8x1xf32>
      %33 = arith.mulf %22, %22 : vector<8x512xf32>
      %cst_26 = arith.constant dense<0.000000e+00> : vector<8xf32>
      %34 = vector.multi_reduction <add>, %33, %cst_26 [1] : vector<8x512xf32> to vector<8xf32>
      %35 = vector.shape_cast %34 : vector<8xf32> to vector<8x1xf32>
      %36 = arith.addf %32, %35 : vector<8x1xf32>
      %c0_27 = arith.constant 0 : index
      %c0_28 = arith.constant 0 : index
      %37 = vector.load %arg10[%c0_27, %c0_28] : memref<8x1xf32, #tpu.memory_space<vmem>>, vector<8x1xf32>
      tpu.vector_store %arg10[%c0_27, %c0_28], %36 {strides = array<i32>} : memref<8x1xf32, #tpu.memory_space<vmem>>, vector<8x1xf32>,
    } else {
    }
    %c0_i32_13 = arith.constant 0 : i32
    %17 = arith.cmpi eq, %arg1, %c0_i32_13 : i32
    %c0_i32_14 = arith.constant 0 : i32
    %18 = arith.cmpi eq, %arg2, %c0_i32_14 : i32
    %19 = arith.andi %17, %18 : i1
    %20 = arith.extui %19 : i1 to i32
    %c0_i32_15 = arith.constant 0 : i32
    %21 = arith.cmpi ne, %20, %c0_i32_15 : i32
    scf.if %21 {
      %c0_16 = arith.constant 0 : index
      %c0_17 = arith.constant 0 : index
      %22 = vector.load %arg9[%c0_16, %c0_17] : memref<8x1xf32, #tpu.memory_space<vmem>>, vector<8x1xf32>
      %cst_18 = arith.constant 0.001953125 : f32
      %23 = vector.broadcast %cst_18 : f32 to vector<8x1xf32>
      %24 = arith.mulf %22, %23 : vector<8x1xf32>
      %c0_19 = arith.constant 0 : index
      %c0_20 = arith.constant 0 : index
      %25 = vector.load %arg10[%c0_19, %c0_20] : memref<8x1xf32, #tpu.memory_space<vmem>>, vector<8x1xf32>
      %cst_21 = arith.constant 0.001953125 : f32
      %26 = vector.broadcast %cst_21 : f32 to vector<8x1xf32>
      %27 = arith.mulf %25, %26 : vector<8x1xf32>
      %28 = arith.mulf %24, %24 : vector<8x1xf32>
      %29 = arith.subf %27, %28 : vector<8x1xf32>
      %cst_22 = arith.constant 0.000000e+00 : f32
      %30 = vector.broadcast %cst_22 : f32 to vector<8x1xf32>
      %31 = arith.maximumf %29, %30 : vector<8x1xf32>
      %c0_23 = arith.constant 0 : index
      %c0_24 = arith.constant 0 : index
      %32 = vector.load %arg5[%c0_23, %c0_24] : memref<8x1xf32, #tpu.memory_space<vmem>>, vector<8x1xf32>
      %cst_25 = arith.constant 9.99999974E-6 : f32
      %33 = vector.broadcast %cst_25 : f32 to vector<8x1xf32>
      %34 = arith.addf %31, %33 : vector<8x1xf32>
      %35 = math.rsqrt %34 : vector<8x1xf32>
      %36 = arith.mulf %32, %35 : vector<8x1xf32>
      %c0_26 = arith.constant 0 : index
      %c0_27 = arith.constant 0 : index
      %37 = vector.load %arg6[%c0_26, %c0_27] : memref<8x1xf32, #tpu.memory_space<vmem>>, vector<8x1xf32>
      %38 = arith.mulf %24, %36 : vector<8x1xf32>
      %39 = arith.subf %37, %38 : vector<8x1xf32>
      %c0_i32_28 = arith.constant 0 : i32
      %c1_i32 = arith.constant 1 : i32
      %40 = arith.muli %c0_i32_28, %c1_i32 : i32
      %c0_i32_29 = arith.constant 0 : i32
      %41 = arith.addi %c0_i32_29, %40 : i32
      %c512_i32 = arith.constant 512 : i32
      %42 = arith.muli %41, %c512_i32 : i32
      %43 = tpu.assume_multiple %42, 128 : i32
      %c0_30 = arith.constant 0 : index
      %44 = arith.index_cast %43 : i32 to index
      %45 = vector.load %arg7[%c0_30, %44] : memref<8x512xf32, #tpu.memory_space<vmem>>, vector<8x512xf32>
      %46 = vector.broadcast %36 : vector<8x1xf32> to vector<8x512xf32>
      %47 = arith.mulf %45, %46 : vector<8x512xf32>
      %48 = vector.broadcast %39 : vector<8x1xf32> to vector<8x512xf32>
      %49 = arith.addf %47, %48 : vector<8x512xf32>
      %c0_31 = arith.constant 0 : index
      %50 = arith.index_cast %43 : i32 to index
      %51 = vector.load %arg7[%c0_31, %50] : memref<8x512xf32, #tpu.memory_space<vmem>>, vector<8x512xf32>
      tpu.vector_store %arg7[%c0_31, %50], %49 {strides = array<i32>} : memref<8x512xf32, #tpu.memory_space<vmem>>, vector<8x512xf32>,
      %c1_i32_32 = arith.constant 1 : i32
    } else {
    }
    return
  }
  func.func @transform_0(%arg0: i32, %arg1: i32, %arg2: i32) -> (i32, i32) {
    %c0_i32 = arith.constant 0 : i32
    return %arg2, %arg1 : i32, i32
  }
  func.func @transform_1(%arg0: i32, %arg1: i32, %arg2: i32) -> (i32, i32) {
    %c0_i32 = arith.constant 0 : i32
    return %arg0, %arg2 : i32, i32
  }
  func.func @transform_2(%arg0: i32, %arg1: i32, %arg2: i32) -> (i32, i32) {
    %c0_i32 = arith.constant 0 : i32
    %c0_i32_0 = arith.constant 0 : i32
    return %arg0, %c0_i32 : i32, i32
  }
  func.func @transform_3(%arg0: i32, %arg1: i32, %arg2: i32) -> (i32, i32) {
    %c0_i32 = arith.constant 0 : i32
    %c0_i32_0 = arith.constant 0 : i32
    return %arg0, %c0_i32 : i32, i32
  }
  func.func @transform_4(%arg0: i32, %arg1: i32, %arg2: i32) -> (i32, i32) {
    %c0_i32 = arith.constant 0 : i32
    %c0_i32_0 = arith.constant 0 : i32
    return %arg0, %c0_i32 : i32, i32
  }
}

</mosaic_0001>

<llo_original>
// kernel: tpu_custom_call.1
$region0: #{tpu_custom_call.1}
  #allocation0 [shape = 'u32[]', space=smem, size = 0x4, offset = 0x4, fixed_abs, tag = 'smem constant byte address 0x4 - core index']
  #allocation1 [shape = 'u32[144,128]{1,0:T(1,128)}', space=vmem, size = 0x12000, scoped, tag = 'internal scratch']
  #allocation2 [shape = 'f32[8,512]{1,0:T(8,128)}', space=vmem, size = 0x4000, scoped, tag = 'scratch operand']
  #allocation3 [shape = 'f32[8,1]{1,0:T(8,128)}', space=vmem, size = 0x1000, scoped, tag = 'scratch operand']
  #allocation4 [shape = 'f32[8,1]{1,0:T(8,128)}', space=vmem, size = 0x1000, scoped, tag = 'scratch operand']
  %s0 = inlined_call_operand.hbm [shape: f32[40,512], index: 0, kind: input, shape index: {}]
  %s1 = inlined_call_operand.vmem [shape: f32[8,40], index: 1, kind: input, shape index: {}]
  %s2 = inlined_call_operand.vmem [shape: f32[8,1], index: 2, kind: input, shape index: {}]
  %s3 = inlined_call_operand.vmem [shape: f32[8,1], index: 3, kind: input, shape index: {}]
  %s4 = inlined_call_operand.hbm [shape: f32[8,512], index: 4, kind: output, shape index: {}]
  %s5 = sld [smem:[#allocation0]]
  $region46: #{tpu_custom_call.1} parent=0
    _
  %s7 = ssub.s32 1, %s5
  %s8 = scalar_select 0, %s7, %s5
  $region1: #{tpu_custom_call.1} parent=0
    #allocation5 [shape = 'u8[81920]{0}', space=vmem, size = 0x14000, scoped, tag = 'input window, operand 0, single buffered']
    #allocation6 [shape = 's32[1]{0}', space=sflag, size = 0x4, scoped, tag = 'scoped memory for tpu_custom_call.1']
    #allocation7 [shape = 's32[1]{0}', space=sflag, size = 0x4, scoped, tag = 'scoped memory for tpu_custom_call.1']
    #allocation8 [shape = 'u8[16384]{0}', space=vmem, size = 0x4000, scoped, tag = 'output window, operand 0, single buffered']
    %9 = vsyncpa [#allocation6], 0
    %10 = vsyncpa [#allocation7], 0
    // Predicated region
    $region2: #{tpu_custom_call.1} parent=1 // pred_check
      _
    $region3: #{tpu_custom_call.1} parent=1 // pred_check_branch
      %12 = sbr.rel (0) target = $region5
    $region4: #{tpu_custom_call.1} parent=1 // pred_region
      %s14 = ssub.s32 2560, 2560
      %15 = vsyncadd [#allocation6], %s14
      %s16 = sshll.u32 [#allocation5], 4
      %s17 = int_to_ptr.vmem [resolvable:$true] %s16
      %22 = dma.hbm_to_vmem [thread:$0]  %s0, 2560, %s17, [#allocation6], 512, 512, 32
    $region5: #{tpu_custom_call.1} parent=1 // pred_fallthru
      _
    // Predicated region
    $region6: #{tpu_custom_call.1} parent=1 // pred_check
      _
    $region7: #{tpu_custom_call.1} parent=1 // pred_check_branch
      %24 = sbr.rel (0) target = $region9
    $region8: #{tpu_custom_call.1} parent=1 // pred_region
      _
    $region9: #{tpu_custom_call.1} parent=1 // pred_fallthru
      _
    // Predicated region
    $region10: #{tpu_custom_call.1} parent=1 // pred_check
      _
    $region11: #{tpu_custom_call.1} parent=1 // pred_check_branch
      %26 = sbr.rel (0) target = $region13
    $region12: #{tpu_custom_call.1} parent=1 // pred_region
      _
    $region13: #{tpu_custom_call.1} parent=1 // pred_fallthru
      _
    // Predicated region
    $region14: #{tpu_custom_call.1} parent=1 // pred_check
      _
    $region15: #{tpu_custom_call.1} parent=1 // pred_check_branch
      %28 = sbr.rel (0) target = $region17
    $region16: #{tpu_custom_call.1} parent=1 // pred_region
      _
    $region17: #{tpu_custom_call.1} parent=1 // pred_fallthru
      _
    // Predicated region
    $region18: #{tpu_custom_call.1} parent=1 // pred_check
      _
    $region19: #{tpu_custom_call.1} parent=1 // pred_check_branch
      %30 = sbr.rel (0) target = $region21
    $region20: #{tpu_custom_call.1} parent=1 // pred_region
      %31 = dma.done [#allocation6], 2560
    $region21: #{tpu_custom_call.1} parent=1 // pred_fallthru
      _
    %p32 = scmp.eq.s32.totalorder 0, 0
    %p33 = scmp.eq.s32.totalorder 0, 0
    %p34 = pnand %p32, %p33
    %p35 = pneg %p34
    // Predicated region
    $region22: #{tpu_custom_call.1} parent=1 // pred_check
      _
    $region23: #{tpu_custom_call.1} parent=1 // pred_check_branch
      %37 = sbr.rel (%p34) target = $region25
    $region24: #{tpu_custom_call.1} parent=1 // pred_region
      %vm38 = vcmask 7168
      %39 = vst.msk [vmem:[#allocation3] sm:$0xff] %vm38, 0.0
      %40 = vst.msk [vmem:[#allocation4] sm:$0xff] %vm38, 0.0
    $region25: #{tpu_custom_call.1} parent=1 // pred_fallthru
      _
    // Predicated region
    $region26: #{tpu_custom_call.1} parent=1 // pred_check
      %p41 = pneg %p33
    $region27: #{tpu_custom_call.1} parent=1 // pred_check_branch
      %43 = sbr.rel (%p41) target = $region29
    $region28: #{tpu_custom_call.1} parent=1 // pred_region
      %44 = vst [vmem:[#allocation2] sm:$0xff] 0.0
      %45 = vst [vmem:[#allocation2 + $0x8] sm:$0xff] 0.0
      %46 = vst [vmem:[#allocation2 + $0x10] sm:$0xff] 0.0
      %47 = vst [vmem:[#allocation2 + $0x18] sm:$0xff] 0.0
    $region29: #{tpu_custom_call.1} parent=1 // pred_fallthru
      _
    %v48 = vld [vmem:[#allocation2] sm:$0xff]
    %v49 = vld [vmem:[#allocation2 + $0x8] sm:$0xff]
    %v50 = vld [vmem:[#allocation2 + $0x10] sm:$0xff]
    %v51 = vld [vmem:[#allocation2 + $0x18] sm:$0xff]
    %v52 = vld [vmem:[%s1] sm:$0xff]
    %v53 = vld [vmem:[#allocation5] sm:$0xff]
    %v54 = vld [vmem:[#allocation5 + $0x8] sm:$0xff]
    %v55 = vld [vmem:[#allocation5 + $0x10] sm:$0xff]
    %v56 = vld [vmem:[#allocation5 + $0x18] sm:$0xff]
    %v57 = vld [vmem:[#allocation5 + $0x20] sm:$0xff]
    %v58 = vld [vmem:[#allocation5 + $0x28] sm:$0xff]
    %v59 = vld [vmem:[#allocation5 + $0x30] sm:$0xff]
    %v60 = vld [vmem:[#allocation5 + $0x38] sm:$0xff]
    %v61 = vld [vmem:[#allocation5 + $0x40] sm:$0xff]
    %v62 = vld [vmem:[#allocation5 + $0x48] sm:$0xff]
    %v63 = vld [vmem:[#allocation5 + $0x50] sm:$0xff]
    %v64 = vld [vmem:[#allocation5 + $0x58] sm:$0xff]
    %v65 = vld [vmem:[#allocation5 + $0x60] sm:$0xff]
    %v66 = vld [vmem:[#allocation5 + $0x68] sm:$0xff]
    %v67 = vld [vmem:[#allocation5 + $0x70] sm:$0xff]
    %v68 = vld [vmem:[#allocation5 + $0x78] sm:$0xff]
    %v69 = vld [vmem:[#allocation5 + $0x80] sm:$0xff]
    %v70 = vld [vmem:[#allocation5 + $0x88] sm:$0xff]
    %v71 = vld [vmem:[#allocation5 + $0x90] sm:$0xff]
    %v72 = vld [vmem:[#allocation5 + $0x98] sm:$0xff]
    %vm73 = vcmask 326656
    %v75 = vsel %vm73, %v52, 0
    %77 = vmatprep.subr.mxu0 0.0
    %78 = vmatpush1.msra.mxu0 0.0
    %79 = vmatprep.subr.mxu0 0.0
    %80 = vmatpush1.msra.mxu0 0.0
    %81 = vmatprep.subr.mxu0 0.0
    %82 = vmatpush1.msra.mxu0 0.0
    %83 = vmatprep.subr.mxu0 0.0
    %84 = vmatpush1.msra.mxu0 0.0
    %85 = vmatprep.subr.mxu0 0.0
    %86 = vmatpush1.msra.mxu0 0.0
    %87 = vmatprep.subr.mxu0 0.0
    %88 = vmatpush1.msra.mxu0 0.0
    %89 = vmatprep.subr.mxu0 0.0
    %90 = vmatpush1.msra.mxu0 0.0
    %91 = vmatprep.subr.mxu0 0.0
    %92 = vmatpush1.msra.mxu0 0.0
    %93 = vmatprep.subr.mxu0 0.0
    %94 = vmatpush1.msra.mxu0 0.0
    %95 = vmatprep.subr.mxu0 0.0
    %96 = vmatpush1.msra.mxu0 0.0
    %97 = vmatprep.subr.mxu0 0.0
    %98 = vmatpush1.msra.mxu0 0.0
    %99 = vmatprep.subr.mxu0 %v70
    %100 = vmatpush1.msra.mxu0 %v69
    %101 = vmatprep.subr.mxu0 %v66
    %102 = vmatpush1.msra.mxu0 %v65
    %103 = vmatprep.subr.mxu0 %v62
    %104 = vmatpush1.msra.mxu0 %v61
    %105 = vmatprep.subr.mxu0 %v58
    %106 = vmatpush1.msra.mxu0 %v57
    %107 = vmatprep.subr.mxu0 %v54
    %108 = vmatpush1.msra.mxu0 %v53
    %109 = vmatprep.subr.mxu0 0.0
    %110 = vmatpush2.msra.mxu0 0.0
    %111 = vmatprep.subr.mxu0 0.0
    %112 = vmatpush2.msra.mxu0 0.0
    %113 = vmatprep.subr.mxu0 0.0
    %114 = vmatpush2.msra.mxu0 0.0
    %115 = vmatprep.subr.mxu0 0.0
    %116 = vmatpush2.msra.mxu0 0.0
    %117 = vmatprep.subr.mxu0 0.0
    %118 = vmatpush2.msra.mxu0 0.0
    %119 = vmatprep.subr.mxu0 0.0
    %120 = vmatpush2.msra.mxu0 0.0
    %121 = vmatprep.subr.mxu0 0.0
    %122 = vmatpush2.msra.mxu0 0.0
    %123 = vmatprep.subr.mxu0 0.0
    %124 = vmatpush2.msra.mxu0 0.0
    %125 = vmatprep.subr.mxu0 0.0
    %126 = vmatpush2.msra.mxu0 0.0
    %127 = vmatprep.subr.mxu0 0.0
    %128 = vmatpush2.msra.mxu0 0.0
    %129 = vmatprep.subr.mxu0 0.0
    %130 = vmatpush2.msra.mxu0 0.0
    %131 = vmatprep.subr.mxu0 0.0
    %132 = vmatpush2.msra.mxu0 0.0
    %133 = vmatprep.subr.mxu0 0.0
    %134 = vmatpush2.msra.mxu0 0.0
    %135 = vmatprep.subr.mxu0 0.0
    %136 = vmatpush2.msra.mxu0 0.0
    %137 = vmatprep.subr.mxu0 0.0
    %138 = vmatpush2.msra.mxu0 0.0
    %139 = vmatprep.subr.mxu0 0.0
    %140 = vmatpush2.msra.mxu0 0.0
    %141 = vmatprep.mubr.f32.mxu0 0.0
    %142 = vmatmul.mubr.f32.gmra.mxu0 %v75
    %v143 = vpop.f32.mrf.mxu0
    %v144 = vadd.f32 0.0, %v143
    %v145 = vpop.f32.mrf.mxu0
    %v146 = vadd.f32 0.0, %v145
    %147 = vdwg.mxu0
    %148 = vmatprep.subr.mxu0 0.0
    %149 = vmatpush1.msra.mxu0 0.0
    %150 = vmatprep.subr.mxu0 0.0
    %151 = vmatpush1.msra.mxu0 0.0
    %152 = vmatprep.subr.mxu0 0.0
    %153 = vmatpush1.msra.mxu0 0.0
    %154 = vmatprep.subr.mxu0 0.0
    %155 = vmatpush1.msra.mxu0 0.0
    %156 = vmatprep.subr.mxu0 0.0
    %157 = vmatpush1.msra.mxu0 0.0
    %158 = vmatprep.subr.mxu0 0.0
    %159 = vmatpush1.msra.mxu0 0.0
    %160 = vmatprep.subr.mxu0 0.0
    %161 = vmatpush1.msra.mxu0 0.0
    %162 = vmatprep.subr.mxu0 0.0
    %163 = vmatpush1.msra.mxu0 0.0
    %164 = vmatprep.subr.mxu0 0.0
    %165 = vmatpush1.msra.mxu0 0.0
    %166 = vmatprep.subr.mxu0 0.0
    %167 = vmatpush1.msra.mxu0 0.0
    %168 = vmatprep.subr.mxu0 0.0
    %169 = vmatpush1.msra.mxu0 0.0
    %170 = vmatprep.subr.mxu0 %v72
    %171 = vmatpush1.msra.mxu0 %v71
    %172 = vmatprep.subr.mxu0 %v68
    %173 = vmatpush1.msra.mxu0 %v67
    %174 = vmatprep.subr.mxu0 %v64
    %175 = vmatpush1.msra.mxu0 %v63
    %176 = vmatprep.subr.mxu0 %v60
    %177 = vmatpush1.msra.mxu0 %v59
    %178 = vmatprep.subr.mxu0 %v56
    %179 = vmatpush1.msra.mxu0 %v55
    %180 = vmatprep.subr.mxu0 0.0
    %181 = vmatpush2.msra.mxu0 0.0
    %182 = vmatprep.subr.mxu0 0.0
    %183 = vmatpush2.msra.mxu0 0.0
    %184 = vmatprep.subr.mxu0 0.0
    %185 = vmatpush2.msra.mxu0 0.0
    %186 = vmatprep.subr.mxu0 0.0
    %187 = vmatpush2.msra.mxu0 0.0
    %188 = vmatprep.subr.mxu0 0.0
    %189 = vmatpush2.msra.mxu0 0.0
    %190 = vmatprep.subr.mxu0 0.0
    %191 = vmatpush2.msra.mxu0 0.0
    %192 = vmatprep.subr.mxu0 0.0
    %193 = vmatpush2.msra.mxu0 0.0
    %194 = vmatprep.subr.mxu0 0.0
    %195 = vmatpush2.msra.mxu0 0.0
    %196 = vmatprep.subr.mxu0 0.0
    %197 = vmatpush2.msra.mxu0 0.0
    %198 = vmatprep.subr.mxu0 0.0
    %199 = vmatpush2.msra.mxu0 0.0
    %200 = vmatprep.subr.mxu0 0.0
    %201 = vmatpush2.msra.mxu0 0.0
    %202 = vmatprep.subr.mxu0 0.0
    %203 = vmatpush2.msra.mxu0 0.0
    %204 = vmatprep.subr.mxu0 0.0
    %205 = vmatpush2.msra.mxu0 0.0
    %206 = vmatprep.subr.mxu0 0.0
    %207 = vmatpush2.msra.mxu0 0.0
    %208 = vmatprep.subr.mxu0 0.0
    %209 = vmatpush2.msra.mxu0 0.0
    %210 = vmatprep.subr.mxu0 0.0
    %211 = vmatpush2.msra.mxu0 0.0
    %212 = vmatprep.mubr.f32.mxu0 0.0
    %213 = vmatmul.mubr.f32.gmra.mxu0 %v75
    %v214 = vpop.f32.mrf.mxu0
    %v215 = vadd.f32 0.0, %v214
    %v216 = vpop.f32.mrf.mxu0
    %v217 = vadd.f32 0.0, %v216
    %218 = vdwg.mxu0
    %v219 = vadd.f32 %v48, %v144
    %v220 = vadd.f32 %v49, %v146
    %v221 = vadd.f32 %v50, %v215
    %v222 = vadd.f32 %v51, %v217
    %223 = vst [vmem:[#allocation2] sm:$0xff] %v219
    %224 = vst [vmem:[#allocation2 + $0x8] sm:$0xff] %v220
    %225 = vst [vmem:[#allocation2 + $0x10] sm:$0xff] %v221
    %226 = vst [vmem:[#allocation2 + $0x18] sm:$0xff] %v222
    // Predicated region
    $region30: #{tpu_custom_call.1} parent=1 // pred_check
      %p227 = pneg %p33
    $region31: #{tpu_custom_call.1} parent=1 // pred_check_branch
      %229 = sbr.rel (%p227) target = $region33
    $region32: #{tpu_custom_call.1} parent=1 // pred_region
      %v230 = vld [vmem:[#allocation2] sm:$0xff]
      %v231 = vld [vmem:[#allocation2 + $0x8] sm:$0xff]
      %v232 = vld [vmem:[#allocation2 + $0x10] sm:$0xff]
      %v233 = vld [vmem:[#allocation2 + $0x18] sm:$0xff]
      %s234 = smul.u32 0, 512
      %s235 = sshra.s32 %s234, 7
      %s236 = sand.u32 %s234, 127
      %s237 = smul.addr %s235, 8
      %s238 = scalar_lea.vmem [#allocation8], %s237
      %239 = vst [vmem:[%s238] sm:$0xff] %v230
      %240 = vst [vmem:[%s238 + $0x8] sm:$0xff] %v231
      %241 = vst [vmem:[%s238 + $0x10] sm:$0xff] %v232
      %242 = vst [vmem:[%s238 + $0x18] sm:$0xff] %v233
      %v243 = vld [vmem:[#allocation3] sm:$0xff]
      %v244 = vadd.f32 %v230, %v231
      %v245 = vadd.f32 %v244, %v232
      %v246 = vadd.f32 %v245, %v233
      %247 = vadd.xlane.f32.xlu0 %v246
      %v248 = vpop.xlane.xlu0 %247
      %v249 = vadd.f32 %v243, %v248
      %vm250 = vcmask 7168
      %251 = vst.msk [vmem:[#allocation3] sm:$0xff] %vm250, %v249
      %v252 = vld [vmem:[#allocation4] sm:$0xff]
      %v253 = vmul.f32 %v230, %v230
      %v254 = vmul.f32 %v231, %v231
      %v255 = vmul.f32 %v232, %v232
      %v256 = vmul.f32 %v233, %v233
      %v257 = vadd.f32 %v253, %v254
      %v258 = vadd.f32 %v257, %v255
      %v259 = vadd.f32 %v258, %v256
      %260 = vadd.xlane.f32.xlu0 %v259
      %v261 = vpop.xlane.xlu0 %260
      %v262 = vadd.f32 %v252, %v261
      %263 = vst.msk [vmem:[#allocation4] sm:$0xff] %vm250, %v262
    $region33: #{tpu_custom_call.1} parent=1 // pred_fallthru
      _
    // Predicated region
    $region34: #{tpu_custom_call.1} parent=1 // pred_check
      _
    $region35: #{tpu_custom_call.1} parent=1 // pred_check_branch
      %265 = sbr.rel (%p34) target = $region37
    $region36: #{tpu_custom_call.1} parent=1 // pred_region
      %v266 = vld [vmem:[#allocation3] sm:$0xff]
      %v267 = vmul.f32 %v266, 0.001953125
      %v268 = vld [vmem:[#allocation4] sm:$0xff]
      %v269 = vmul.f32 %v268, 0.001953125
      %v270 = vmul.f32 %v267, %v267
      %v271 = vsub.f32 %v269, %v270
      %v272 = vmax.f32 %v271, 0.0
      %v273 = vld [vmem:[%s2] sm:$0xff]
      %v274 = vadd.f32 %v272, 1e-05
      %v275 = vrsqrt.pop %v274
      %v276 = vmul.f32 %v273, %v275
      %v277 = vld [vmem:[%s3] sm:$0xff]
      %v278 = vmul.f32 %v267, %v276
      %v279 = vsub.f32 %v277, %v278
      %v280 = vld [vmem:[#allocation8] sm:$0xff]
      %v281 = vld [vmem:[#allocation8 + $0x8] sm:$0xff]
      %v282 = vld [vmem:[#allocation8 + $0x10] sm:$0xff]
      %v283 = vld [vmem:[#allocation8 + $0x18] sm:$0xff]
      %285 = vset.pattern.permute.xlu0 0
      %286 = vperm.xlu0 %285, %v276
      %v287 = vpop.permute.xlu0 %286
      %v289 = vmul.f32 %v280, %v287
      %v290 = vmul.f32 %v281, %v287
      %v291 = vmul.f32 %v282, %v287
      %v292 = vmul.f32 %v283, %v287
      %294 = vset.pattern.permute.xlu0 0
      %295 = vperm.xlu0 %294, %v279
      %v296 = vpop.permute.xlu0 %295
      %v298 = vadd.f32 %v289, %v296
      %v299 = vadd.f32 %v290, %v296
      %v300 = vadd.f32 %v291, %v296
      %v301 = vadd.f32 %v292, %v296
      %302 = vst [vmem:[#allocation8] sm:$0xff] %v298
      %303 = vst [vmem:[#allocation8 + $0x8] sm:$0xff] %v299
      %304 = vst [vmem:[#allocation8 + $0x10] sm:$0xff] %v300
      %305 = vst [vmem:[#allocation8 + $0x18] sm:$0xff] %v301
    $region37: #{tpu_custom_call.1} parent=1 // pred_fallthru
      _
    // Predicated region
    $region38: #{tpu_custom_call.1} parent=1 // pred_check
      _
    $region39: #{tpu_custom_call.1} parent=1 // pred_check_branch
      %307 = sbr.rel (0) target = $region41
    $region40: #{tpu_custom_call.1} parent=1 // pred_region
      %s309 = ssub.s32 512, 512
      %310 = vsyncadd [#allocation7], %s309
      %s312 = sshll.u32 [#allocation8], 4
      %s313 = int_to_ptr.vmem [resolvable:$true] %s312
      %315 = dma.vmem_to_hbm [thread:$0]  %s313, 512, %s4, [#allocation7]
    $region41: #{tpu_custom_call.1} parent=1 // pred_fallthru
      _
    // Predicated region
    $region42: #{tpu_custom_call.1} parent=1 // pred_check
      _
    $region43: #{tpu_custom_call.1} parent=1 // pred_check_branch
      %317 = sbr.rel (0) target = $region45
    $region44: #{tpu_custom_call.1} parent=1 // pred_region
      %318 = dma.done [#allocation7], 512
    $region45: #{tpu_custom_call.1} parent=1 // pred_fallthru
      _
    %319 = vsyncpa [#allocation6], 1
    %320 = vsyncpa [#allocation7], 1

</llo_original>
